<compile_context>
chip_gen: v6e
topology: v6e:2x2x1
jax: 0.10.0
libtpu: 0.0.40
codegen_flags: <defaults>
</compile_context>

<pallas_src>
import functools

import jax
import jax.numpy as jnp
from jax import lax
from jax.experimental import pallas as pl
from jax.experimental.pallas import tpu as pltpu


def _round_up(x, m):
    return ((x + m - 1) // m) * m


def _approx_gelu_proj_kernel(x_ref, w_ref, b_ref, o_ref, acc_ref):
    """Grid point (i, j, k): acc += x_tile @ w_tile^T; GELU epilogue on last k."""
    k = pl.program_id(2)

    @pl.when(k == 0)
    def _():
        acc_ref[...] = jnp.zeros_like(acc_ref)

    # x_ref: (tm, tk); w_ref: (tn, tk) in the original (dim_out, dim_in) layout.
    # Contract the last axis of both -> (tm, tn), accumulated in f32 on the MXU.
    acc_ref[...] += lax.dot_general(
        x_ref[...], w_ref[...],
        dimension_numbers=(((1,), (1,)), ((), ())),
        preferred_element_type=jnp.float32)

    @pl.when(k == pl.num_programs(2) - 1)
    def _():
        y = acc_ref[...] + b_ref[...].astype(jnp.float32)   # epilogue in f32
        o_ref[...] = (y * jax.nn.sigmoid(1.702 * y)).astype(o_ref.dtype)


@functools.partial(jax.jit, static_argnames=("tile_m", "tile_n", "tile_k"))
def approximate_gelu(x, weight, bias, *, tile_m=256, tile_n=512, tile_k=2048):
    """x: (B, S, dim_in); weight: (dim_out, dim_in); bias: (dim_out,)."""
    B, S, dim_in = x.shape
    dim_out = weight.shape[0]
    M = B * S
    out_dtype = x.dtype

    # Clamp tiles to the (padded) problem; sublane dims multiple of 8, lane dims
    # multiple of 128 so output stores stay unmasked/lane-dense.
    tm = min(tile_m, _round_up(M, 8))
    tn = min(tile_n, _round_up(dim_out, 128))
    tk = min(tile_k, _round_up(dim_in, 128))
    Mp = _round_up(M, tm)
    Np = _round_up(dim_out, tn)
    Kp = _round_up(dim_in, tk)

    # bf16 MXU inputs (zero padding contributes 0 to the accumulation).
    x2 = x.reshape(M, dim_in).astype(jnp.bfloat16)
    w2 = weight.astype(jnp.bfloat16)
    b2 = bias.astype(jnp.float32)
    if (Mp, Kp) != (M, dim_in):
        x2 = jnp.pad(x2, ((0, Mp - M), (0, Kp - dim_in)))
    if (Np, Kp) != (dim_out, dim_in):
        w2 = jnp.pad(w2, ((0, Np - dim_out), (0, Kp - dim_in)))
    if Np != dim_out:
        b2 = jnp.pad(b2, (0, Np - dim_out))
    b2 = b2.reshape(1, Np)

    grid = (Mp // tm, Np // tn, Kp // tk)

    out_itemsize = jnp.dtype(out_dtype).itemsize
    # Double-buffered x/w/out tiles + bias + f32 accumulator, with headroom,
    # but never above v7x's 64 MiB physical VMEM.
    vmem_bytes = (2 * (tm * tk + tn * tk) * 2      # bf16 x and w tiles (x2 bufs)
                  + 2 * tn * 4                      # bias tile
                  + 2 * tm * tn * out_itemsize      # output tiles (x2 bufs)
                  + tm * tn * 4)                    # f32 accumulator scratch
    vmem_limit = int(min(max(2 * vmem_bytes, 32 * 1024 * 1024),
                         64 * 1024 * 1024))

    cost = pl.CostEstimate(
        flops=2 * Mp * Kp * Np,
        transcendentals=Mp * Np,
        bytes_accessed=(Mp * Kp + Np * Kp) * 2 + Mp * Np * out_itemsize)

    out2 = pl.pallas_call(
        _approx_gelu_proj_kernel,
        out_shape=jax.ShapeDtypeStruct((Mp, Np), out_dtype),
        grid_spec=pltpu.PrefetchScalarGridSpec(
            num_scalar_prefetch=0,
            grid=grid,
            in_specs=[
                pl.BlockSpec((tm, tk), lambda i, j, k: (i, k)),   # X rows
                pl.BlockSpec((tn, tk), lambda i, j, k: (j, k)),   # W (dim_out, dim_in)
                pl.BlockSpec((1, tn), lambda i, j, k: (0, j)),    # bias
            ],
            out_specs=pl.BlockSpec((tm, tn), lambda i, j, k: (i, j)),
            scratch_shapes=[pltpu.VMEM((tm, tn), jnp.float32)],
        ),
        compiler_params=pltpu.CompilerParams(
            dimension_semantics=("parallel", "parallel", "arbitrary"),
            vmem_limit_bytes=vmem_limit,
        ),
        cost_estimate=cost,
    )(x2, w2, b2)

    return out2[:M, :dim_out].reshape(B, S, dim_out)


def _reference(x, weight, bias):
    # Same bf16 MXU inputs / f32 accumulate as the kernel, epilogue in f32.
    y = jnp.einsum("bsi,oi->bso",
                   x.astype(jnp.bfloat16), weight.astype(jnp.bfloat16),
                   preferred_element_type=jnp.float32) + bias.astype(jnp.float32)
    return (y * jax.nn.sigmoid(1.702 * y)).astype(x.dtype)


if __name__ == "__main__":
    key = jax.random.PRNGKey(0)
    kx, kw, kb = jax.random.split(key, 3)

    # Small shapes consistent with the module: (B, S, dim_in) -> (B, S, dim_out).
    B, S, dim_in, dim_out = 2, 8, 32, 64
    x = jax.random.normal(kx, (B, S, dim_in), dtype=jnp.float32)
    bound = 1.0 / (dim_in ** 0.5)
    weight = jax.random.uniform(kw, (dim_out, dim_in), jnp.float32, -bound, bound)
    bias = jax.random.uniform(kb, (dim_out,), jnp.float32, -bound, bound)

    out = jax.block_until_ready(approximate_gelu(x, weight, bias))
    ref = _reference(x, weight, bias)
    assert out.shape == (B, S, dim_out)
    assert jnp.allclose(out, ref, atol=2e-3, rtol=2e-3), "mismatch vs reference (small)"

    # Second case exercises M/N/K zero-padding and a multi-tile M grid.
    B2, S2, di2, do2 = 2, 300, 200, 264
    kx2, kw2, kb2 = jax.random.split(jax.random.PRNGKey(1), 3)
    x_b = jax.random.normal(kx2, (B2, S2, di2), dtype=jnp.float32)
    bound2 = 1.0 / (di2 ** 0.5)
    w_b = jax.random.uniform(kw2, (do2, di2), jnp.float32, -bound2, bound2)
    b_b = jax.random.uniform(kb2, (do2,), jnp.float32, -bound2, bound2)

    out_b = jax.block_until_ready(approximate_gelu(x_b, w_b, b_b))
    ref_b = _reference(x_b, w_b, b_b)
    assert out_b.shape == (B2, S2, do2)
    assert jnp.allclose(out_b, ref_b, atol=2e-3, rtol=2e-3), "mismatch vs reference (padded)"

    print("KERNEL_OK")
</pallas_src>

<mosaic_0001>
module attributes {stable_mosaic.version = 11 : i64} {
  func.func @_approx_gelu_proj_kernel(%arg0: i32, %arg1: i32, %arg2: i32, %arg3: memref<16x128xbf16, #tpu.memory_space<vmem>>, %arg4: memref<128x128xbf16, #tpu.memory_space<vmem>>, %arg5: memref<1x128xf32, #tpu.memory_space<vmem>>, %arg6: memref<16x128xf32, #tpu.memory_space<vmem>>, %arg7: memref<16x128xf32, #tpu.memory_space<vmem>>) attributes {dimension_semantics = [#tpu.dimension_semantics<parallel>, #tpu.dimension_semantics<parallel>, #tpu.dimension_semantics<arbitrary>], iteration_bounds = array<i64: 1, 1, 1>, scalar_prefetch = 0 : i64, scratch_operands = 1 : i64, tpu.core_type = #tpu.core_type<tc>, window_params = [{transform_indices = @transform_0, window_bounds = array<i64: 16, 128>}, {transform_indices = @transform_1, window_bounds = array<i64: 128, 128>}, {transform_indices = @transform_2, window_bounds = array<i64: 1, 128>}, {transform_indices = @transform_3, window_bounds = array<i64: 16, 128>}]} {
    %c0_i32 = arith.constant 0 : i32
    %0 = arith.cmpi eq, %arg2, %c0_i32 : i32
    %1 = arith.extui %0 : i1 to i32
    %c0_i32_0 = arith.constant 0 : i32
    %2 = arith.cmpi ne, %1, %c0_i32_0 : i32
    scf.if %2 {
      %cst_10 = arith.constant 0.000000e+00 : f32
      %12 = vector.broadcast %cst_10 : f32 to vector<16x128xf32>
      %c0_11 = arith.constant 0 : index
      %c0_12 = arith.constant 0 : index
      %13 = vector.load %arg7[%c0_11, %c0_12] : memref<16x128xf32, #tpu.memory_space<vmem>>, vector<16x128xf32>
      tpu.vector_store %arg7[%c0_11, %c0_12], %12 {strides = array<i32>} : memref<16x128xf32, #tpu.memory_space<vmem>>, vector<16x128xf32>,
    } else {
    }
    %c0 = arith.constant 0 : index
    %c0_1 = arith.constant 0 : index
    %3 = vector.load %arg7[%c0, %c0_1] : memref<16x128xf32, #tpu.memory_space<vmem>>, vector<16x128xf32>
    %c0_2 = arith.constant 0 : index
    %c0_3 = arith.constant 0 : index
    %4 = vector.load %arg3[%c0_2, %c0_3] : memref<16x128xbf16, #tpu.memory_space<vmem>>, vector<16x128xbf16>
    %c0_4 = arith.constant 0 : index
    %c0_5 = arith.constant 0 : index
    %5 = vector.load %arg4[%c0_4, %c0_5] : memref<128x128xbf16, #tpu.memory_space<vmem>>, vector<128x128xbf16>
    %cst = arith.constant dense<0.000000e+00> : vector<16x128xf32>
    %6 = tpu.matmul %4, %5, %cst {dimension_numbers = #tpu.dot_dimension_numbers<[1], [1], [0], [0], [0, 0, 1, 0], [], []>} : vector<16x128xbf16>, vector<128x128xbf16>, vector<16x128xf32> -> vector<16x128xf32>
    %7 = arith.addf %3, %6 : vector<16x128xf32>
    %c0_6 = arith.constant 0 : index
    %c0_7 = arith.constant 0 : index
    %8 = vector.load %arg7[%c0_6, %c0_7] : memref<16x128xf32, #tpu.memory_space<vmem>>, vector<16x128xf32>
    tpu.vector_store %arg7[%c0_6, %c0_7], %7 {strides = array<i32>} : memref<16x128xf32, #tpu.memory_space<vmem>>, vector<16x128xf32>,
    %c0_i32_8 = arith.constant 0 : i32
    %9 = arith.cmpi eq, %arg2, %c0_i32_8 : i32
    %10 = arith.extui %9 : i1 to i32
    %c0_i32_9 = arith.constant 0 : i32
    %11 = arith.cmpi ne, %10, %c0_i32_9 : i32
    scf.if %11 {
      %c0_10 = arith.constant 0 : index
      %c0_11 = arith.constant 0 : index
      %12 = vector.load %arg7[%c0_10, %c0_11] : memref<16x128xf32, #tpu.memory_space<vmem>>, vector<16x128xf32>
      %c0_12 = arith.constant 0 : index
      %c0_13 = arith.constant 0 : index
      %13 = vector.load %arg5[%c0_12, %c0_13] : memref<1x128xf32, #tpu.memory_space<vmem>>, vector<1x128xf32>
      %14 = vector.broadcast %13 : vector<1x128xf32> to vector<16x128xf32>
      %15 = arith.addf %12, %14 : vector<16x128xf32>
      %cst_14 = arith.constant 1.702000e+00 : f32
      %16 = vector.broadcast %cst_14 : f32 to vector<16x128xf32>
      %17 = arith.mulf %16, %15 : vector<16x128xf32>
      %18 = arith.negf %17 : vector<16x128xf32>
      %19 = math.exp %18 : vector<16x128xf32>
      %cst_15 = arith.constant 1.000000e+00 : f32
      %20 = vector.broadcast %cst_15 : f32 to vector<16x128xf32>
      %21 = arith.addf %20, %19 : vector<16x128xf32>
      %22 = arith.divf %20, %21 : vector<16x128xf32>
      %23 = arith.mulf %15, %22 : vector<16x128xf32>
      %c0_16 = arith.constant 0 : index
      %c0_17 = arith.constant 0 : index
      %24 = vector.load %arg6[%c0_16, %c0_17] : memref<16x128xf32, #tpu.memory_space<vmem>>, vector<16x128xf32>
      tpu.vector_store %arg6[%c0_16, %c0_17], %23 {strides = array<i32>} : memref<16x128xf32, #tpu.memory_space<vmem>>, vector<16x128xf32>,
    } else {
    }
    return
  }
  func.func @transform_0(%arg0: i32, %arg1: i32, %arg2: i32) -> (i32, i32) {
    %c0_i32 = arith.constant 0 : i32
    return %arg0, %arg2 : i32, i32
  }
  func.func @transform_1(%arg0: i32, %arg1: i32, %arg2: i32) -> (i32, i32) {
    %c0_i32 = arith.constant 0 : i32
    return %arg1, %arg2 : i32, i32
  }
  func.func @transform_2(%arg0: i32, %arg1: i32, %arg2: i32) -> (i32, i32) {
    %c0_i32 = arith.constant 0 : i32
    %c0_i32_0 = arith.constant 0 : i32
    return %c0_i32, %arg1 : i32, i32
  }
  func.func @transform_3(%arg0: i32, %arg1: i32, %arg2: i32) -> (i32, i32) {
    %c0_i32 = arith.constant 0 : i32
    return %arg0, %arg1 : i32, i32
  }
}

</mosaic_0001>

<llo_original>
// kernel: approximate_gelu.1
$region0: #{approximate_gelu.1}
  #allocation0 [shape = 'u32[]', space=smem, size = 0x4, offset = 0x4, fixed_abs, tag = 'smem constant byte address 0x4 - core index']
  #allocation1 [shape = 'u32[144,128]{1,0:T(1,128)}', space=vmem, size = 0x12000, scoped, tag = 'internal scratch']
  #allocation2 [shape = 'f32[16,128]{1,0:T(8,128)}', space=vmem, size = 0x2000, scoped, tag = 'scratch operand']
  %s0 = inlined_call_operand.vmem [shape: bf16[16,128], index: 0, kind: input, shape index: {}]
  %s1 = inlined_call_operand.vmem [shape: bf16[128,128], index: 1, kind: input, shape index: {}]
  %s2 = inlined_call_operand.vmem [shape: f32[1,128], index: 2, kind: input, shape index: {}]
  %s3 = inlined_call_operand.vmem [shape: f32[16,128], index: 3, kind: output, shape index: {}]
  %s4 = sld [smem:[#allocation0]]
  $region30: #{approximate_gelu.1} parent=0
    _
  %s6 = ssub.s32 1, %s4
  %s7 = scalar_select 0, %s6, %s4
  // Predicated region
  $region2: #{approximate_gelu.1} parent=0 // pred_check
    _
  $region3: #{approximate_gelu.1} parent=0 // pred_check_branch
    %9 = sbr.rel (0) target = $region5
  $region4: #{approximate_gelu.1} parent=0 // pred_region
    _
  $region5: #{approximate_gelu.1} parent=0 // pred_fallthru
    _
  // Predicated region
  $region6: #{approximate_gelu.1} parent=0 // pred_check
    _
  $region7: #{approximate_gelu.1} parent=0 // pred_check_branch
    %11 = sbr.rel (0) target = $region9
  $region8: #{approximate_gelu.1} parent=0 // pred_region
    _
  $region9: #{approximate_gelu.1} parent=0 // pred_fallthru
    _
  // Predicated region
  $region10: #{approximate_gelu.1} parent=0 // pred_check
    _
  $region11: #{approximate_gelu.1} parent=0 // pred_check_branch
    %13 = sbr.rel (0) target = $region13
  $region12: #{approximate_gelu.1} parent=0 // pred_region
    _
  $region13: #{approximate_gelu.1} parent=0 // pred_fallthru
    _
  %p15 = scmp.eq.s32.totalorder 0, 0
  // Predicated region
  $region14: #{approximate_gelu.1} parent=0 // pred_check
    %p16 = pneg %p15
  $region15: #{approximate_gelu.1} parent=0 // pred_check_branch
    %18 = sbr.rel (%p16) target = $region17
  $region16: #{approximate_gelu.1} parent=0 // pred_region
    %19 = vst [vmem:[#allocation2] sm:$0xff] 0.0
    %20 = vst [vmem:[#allocation2 + $0x8] sm:$0xff] 0.0
  $region17: #{approximate_gelu.1} parent=0 // pred_fallthru
    _
  %v21 = vld [vmem:[#allocation2] sm:$0xff]
  %v22 = vld [vmem:[#allocation2 + $0x8] sm:$0xff]
  %v23 = vld [vmem:[%s0] sm:$0xf]
  %v24 = vld [vmem:[%s0 + $0x4] sm:$0xf]
  %v25 = vld [vmem:[%s1] sm:$0xf]
  %v26 = vld [vmem:[%s1 + $0x4] sm:$0xf]
  %v27 = vld [vmem:[%s1 + $0x8] sm:$0xf]
  %v28 = vld [vmem:[%s1 + $0xc] sm:$0xf]
  %v29 = vld [vmem:[%s1 + $0x10] sm:$0xf]
  %v30 = vld [vmem:[%s1 + $0x14] sm:$0xf]
  %v31 = vld [vmem:[%s1 + $0x18] sm:$0xf]
  %v32 = vld [vmem:[%s1 + $0x1c] sm:$0xf]
  %v33 = vld [vmem:[%s1 + $0x20] sm:$0xf]
  %v34 = vld [vmem:[%s1 + $0x24] sm:$0xf]
  %v35 = vld [vmem:[%s1 + $0x28] sm:$0xf]
  %v36 = vld [vmem:[%s1 + $0x2c] sm:$0xf]
  %v37 = vld [vmem:[%s1 + $0x30] sm:$0xf]
  %v38 = vld [vmem:[%s1 + $0x34] sm:$0xf]
  %v39 = vld [vmem:[%s1 + $0x38] sm:$0xf]
  %v40 = vld [vmem:[%s1 + $0x3c] sm:$0xf]
  %v43 = vunpack.c.l.b16 %v23
  %v44 = vunpack.c.l.b16 %v24
  %v45 = vpack.c.b16 %v44, %v43
  %v63 = vunpack.c.l.b16 %v25
  %v64 = vunpack.c.l.b16 %v26
  %v65 = vunpack.c.l.b16 %v27
  %v66 = vunpack.c.l.b16 %v28
  %v67 = vunpack.c.l.b16 %v29
  %v68 = vunpack.c.l.b16 %v30
  %v69 = vunpack.c.l.b16 %v31
  %v70 = vunpack.c.l.b16 %v32
  %v71 = vunpack.c.l.b16 %v33
  %v72 = vunpack.c.l.b16 %v34
  %v73 = vunpack.c.l.b16 %v35
  %v74 = vunpack.c.l.b16 %v36
  %v75 = vunpack.c.l.b16 %v37
  %v76 = vunpack.c.l.b16 %v38
  %v77 = vunpack.c.l.b16 %v39
  %v78 = vunpack.c.l.b16 %v40
  %v79 = vpack.c.b16 %v64, %v63
  %v80 = vpack.c.b16 %v66, %v65
  %v81 = vpack.c.b16 %v68, %v67
  %v82 = vpack.c.b16 %v70, %v69
  %v83 = vpack.c.b16 %v72, %v71
  %v84 = vpack.c.b16 %v74, %v73
  %v85 = vpack.c.b16 %v76, %v75
  %v86 = vpack.c.b16 %v78, %v77
  %95 = vmatprep.subr.bf16.mxu0 0
  %96 = vmatpush1.bf16.xpose.msra.mxu0 %v86
  %97 = vmatprep.subr.bf16.mxu0 0
  %98 = vmatpush1.bf16.xpose.msra.mxu0 %v85
  %99 = vmatprep.subr.bf16.mxu0 0
  %100 = vmatpush1.bf16.xpose.msra.mxu0 %v84
  %101 = vmatprep.subr.bf16.mxu0 0
  %102 = vmatpush1.bf16.xpose.msra.mxu0 %v83
  %103 = vmatprep.subr.bf16.mxu0 0
  %104 = vmatpush1.bf16.xpose.msra.mxu0 %v82
  %105 = vmatprep.subr.bf16.mxu0 0
  %106 = vmatpush1.bf16.xpose.msra.mxu0 %v81
  %107 = vmatprep.subr.bf16.mxu0 0
  %108 = vmatpush1.bf16.xpose.msra.mxu0 %v80
  %109 = vmatprep.subr.bf16.mxu0 0
  %110 = vmatpush1.bf16.xpose.msra.mxu0 %v79
  %111 = vmatprep.subr.bf16.mxu0 0
  %112 = vmatpush2.bf16.xpose.msra.mxu0 0
  %113 = vmatprep.subr.bf16.mxu0 0
  %114 = vmatpush2.bf16.xpose.msra.mxu0 0
  %115 = vmatprep.subr.bf16.mxu0 0
  %116 = vmatpush2.bf16.xpose.msra.mxu0 0
  %117 = vmatprep.subr.bf16.mxu0 0
  %118 = vmatpush2.bf16.xpose.msra.mxu0 0
  %119 = vmatprep.subr.bf16.mxu0 0
  %120 = vmatpush2.bf16.xpose.msra.mxu0 0
  %121 = vmatprep.subr.bf16.mxu0 0
  %122 = vmatpush2.bf16.xpose.msra.mxu0 0
  %123 = vmatprep.subr.bf16.mxu0 0
  %124 = vmatpush2.bf16.xpose.msra.mxu0 0
  %125 = vmatprep.subr.bf16.mxu0 0
  %126 = vmatpush2.bf16.xpose.msra.mxu0 0
  %127 = vmatprep.mubr.bf16.mxu0 0
  %128 = vmatmul.mubr.bf16.gmra.mxu0 %v45
  %v129 = vpop.f32.mrf.mxu0
  %v130 = vadd.f32 0.0, %v129
  %v131 = vpop.f32.mrf.mxu0
  %v132 = vpop.f32.mrf.mxu0
  %v133 = vadd.f32 0.0, %v132
  %v134 = vpop.f32.mrf.mxu0
  %135 = vdwg.mxu0
  %v136 = vadd.f32 %v21, %v130
  %v137 = vadd.f32 %v22, %v133
  %138 = vst [vmem:[#allocation2] sm:$0xff] %v136
  %139 = vst [vmem:[#allocation2 + $0x8] sm:$0xff] %v137
  // Predicated region
  $region18: #{approximate_gelu.1} parent=0 // pred_check
    %p140 = pneg %p15
  $region19: #{approximate_gelu.1} parent=0 // pred_check_branch
    %142 = sbr.rel (%p140) target = $region21
  $region20: #{approximate_gelu.1} parent=0 // pred_region
    %v143 = vld [vmem:[#allocation2] sm:$0xff]
    %v144 = vld [vmem:[#allocation2 + $0x8] sm:$0xff]
    %v145 = vld [vmem:[%s2] sm:$0x1]
    %v147 = vlaneseq
    %v148 = vshrl.u32 %v147, 7
    %v149 = vsub.s32 0, %v148
    %v150 = vrot.slane %v145, %v149
    %v152 = vadd.f32 %v143, %v150
    %v153 = vadd.f32 %v144, %v150
    %v154 = vmul.f32 %v152, 1.702
    %v155 = vmul.f32 %v153, 1.702
    %v156 = vxor.u32 %v154, 2147483648
    %v157 = vxor.u32 %v155, 2147483648
    %v158 = vmul.f32 %v156, 1.442695
    %v159 = vpow.pop %v158
    %v160 = vmul.f32 %v157, 1.442695
    %v161 = vpow.pop %v160
    %v162 = vadd.f32 %v159, 1.0
    %v163 = vadd.f32 %v161, 1.0
    %v164 = vrcp.pop %v162
    %v165 = vmul.f32 1.0, %v164
    %v166 = vrcp.pop %v163
    %v167 = vmul.f32 1.0, %v166
    %v168 = vmul.f32 %v152, %v165
    %v169 = vmul.f32 %v153, %v167
    %170 = vst [vmem:[%s3] sm:$0xff] %v168
    %171 = vst [vmem:[%s3 + $0x8] sm:$0xff] %v169
  $region21: #{approximate_gelu.1} parent=0 // pred_fallthru
    _
  // Predicated region
  $region22: #{approximate_gelu.1} parent=0 // pred_check
    _
  $region23: #{approximate_gelu.1} parent=0 // pred_check_branch
    %173 = sbr.rel (0) target = $region25
  $region24: #{approximate_gelu.1} parent=0 // pred_region
    _
  $region25: #{approximate_gelu.1} parent=0 // pred_fallthru
    _
  // Predicated region
  $region26: #{approximate_gelu.1} parent=0 // pred_check
    _
  $region27: #{approximate_gelu.1} parent=0 // pred_check_branch
    %175 = sbr.rel (0) target = $region29
  $region28: #{approximate_gelu.1} parent=0 // pred_region
    _
  $region29: #{approximate_gelu.1} parent=0 // pred_fallthru
    _

</llo_original>
